<compile_context>
chip_gen: v6e
topology: v6e:2x2x1
jax: 0.10.0
libtpu: 0.0.40
codegen_flags: <defaults>
</compile_context>

<pallas_src>
import math

import jax
import jax.numpy as jnp
from jax import lax
from jax.experimental import pallas as pl
from jax.experimental.pallas import tpu as pltpu

# ---- model hyperparameters (small, consistent with the module) ----
B = 8            # rows per molecule/text embedding pair
D_MOLECULE = 16
D_TEXT = 24
D_MODEL = 32
N_LAYERS = 2     # ValueMLP: Linear(d_model,latent) + (n_layers-1) hidden + Linear(latent,1)
LATENT_DIM = 32
DROPOUT_RATE = 0.1   # unused at inference (identity)

_INV_SCALE = 1.0 / math.sqrt(D_MODEL)   # pure-Python constant, no device round-trip
_OUT_SUB, _OUT_LANE = 8, 128            # lane-dense output tile per grid step


def _fusion_kernel(mol_ref, txt_ref,
                   wqk_ref, bqk_ref, wv_ref, bv_ref,
                   w1_ref, b1_ref, w2_ref, b2_ref,
                   wo_ref, bo_ref,
                   out_ref):
    mol = mol_ref[0]          # [B, D_MOLECULE]
    txt = txt_ref[0]          # [B, D_TEXT]

    # --- AttentionFusionModel ---
    # Fused Q/K projection: one matmul against [D_TEXT, 2*D_MODEL], then slice.
    qk = jnp.dot(txt, wqk_ref[...], preferred_element_type=jnp.float32) + bqk_ref[...]
    q = qk[:, :D_MODEL]
    k = qk[:, D_MODEL:]
    v = jnp.dot(mol, wv_ref[...], preferred_element_type=jnp.float32) + bv_ref[...]

    # scores = (q @ k^T) / sqrt(d_model) without an explicit transpose.
    scores = lax.dot_general(q, k, (((1,), (1,)), ((), ())),
                             preferred_element_type=jnp.float32) * _INV_SCALE
    scores = scores - jnp.max(scores, axis=-1, keepdims=True)
    e = jnp.exp(scores)
    attn = e * pl.reciprocal(jnp.sum(e, axis=-1, keepdims=True), approx=True)
    fused = jnp.dot(attn, v, preferred_element_type=jnp.float32)          # [B, D_MODEL]

    # --- ValueMLP (Dropout = identity at inference) ---
    h = jnp.maximum(
        jnp.dot(fused, w1_ref[...], preferred_element_type=jnp.float32) + b1_ref[...], 0.0)
    h = jnp.maximum(
        jnp.dot(h, w2_ref[...], preferred_element_type=jnp.float32) + b2_ref[...], 0.0)

    # Final Linear(latent, 1) on the VPU: broadcast row multiply + lane reduce.
    val = jnp.sum(h * wo_ref[...], axis=-1, keepdims=True) + bo_ref[...]  # [B, 1]

    # Numerically stable softplus, then global sum for this pair.
    sp = jnp.maximum(val, 0.0) + jnp.log(1.0 + jnp.exp(-jnp.abs(val)))
    total = jnp.sum(sp)

    # Lane-dense output: one full unmasked (8,128) tile per grid step.
    out_ref[...] = jnp.full(out_ref.shape, total, dtype=out_ref.dtype)


def _full_spec(shape):
    """Whole-array VMEM block, fetched once (constant block index across the grid)."""
    idx = (0,) * len(shape)
    return pl.BlockSpec(shape, lambda p: idx)


def fusion_model_forward_batched(molecule_embeddings, text_embeddings, packed):
    """molecule_embeddings: [P, B, D_MOLECULE]; text_embeddings: [P, B, D_TEXT].

    Returns a [P] float32 vector: FusionModel.forward() for each pair, evaluated
    with one pallas_call (grid=(P,), parallel over TensorCores where available).
    """
    P = molecule_embeddings.shape[0]
    args = (molecule_embeddings, text_embeddings,
            packed["wqk"], packed["bqk"], packed["wv"], packed["bv"],
            packed["w1"], packed["b1"], packed["w2"], packed["b2"],
            packed["wo_row"], packed["bo"])
    in_specs = [
        pl.BlockSpec((1, B, D_MOLECULE), lambda p: (p, 0, 0)),
        pl.BlockSpec((1, B, D_TEXT), lambda p: (p, 0, 0)),
    ] + [_full_spec(a.shape) for a in args[2:]]

    out = pl.pallas_call(
        _fusion_kernel,
        out_shape=jax.ShapeDtypeStruct((P, _OUT_SUB, _OUT_LANE), jnp.float32),
        grid=(P,),
        in_specs=in_specs,
        out_specs=pl.BlockSpec((1, _OUT_SUB, _OUT_LANE), lambda p: (p, 0, 0)),
        compiler_params=pltpu.CompilerParams(dimension_semantics=("parallel",)),
    )(*args)
    return out[:, 0, 0]


def fusion_model_forward(molecule_embedding, text_embedding, packed):
    """Single (molecule, text) pair -> scalar, matching FusionModel.forward()."""
    out = fusion_model_forward_batched(
        molecule_embedding[None], text_embedding[None], packed)
    return out[0]


def init_params(key):
    """Deterministic parameter init (uniform, PyTorch-Linear-like fan-in scaling)."""
    def linear(key, d_in, d_out):
        kw, kb = jax.random.split(key)
        bound = 1.0 / math.sqrt(d_in)
        w = jax.random.uniform(kw, (d_in, d_out), jnp.float32, -bound, bound)
        b = jax.random.uniform(kb, (1, d_out), jnp.float32, -bound, bound)
        return w, b

    keys = jax.random.split(key, 6)
    wq, bq = linear(keys[0], D_TEXT, D_MODEL)
    wk, bk = linear(keys[1], D_TEXT, D_MODEL)
    wv, bv = linear(keys[2], D_MOLECULE, D_MODEL)
    w1, b1 = linear(keys[3], D_MODEL, LATENT_DIM)
    w2, b2 = linear(keys[4], LATENT_DIM, LATENT_DIM)   # n_layers - 1 = 1 hidden layer
    wo, bo = linear(keys[5], LATENT_DIM, 1)
    return dict(wq=wq, bq=bq, wk=wk, bk=bk, wv=wv, bv=bv,
                w1=w1, b1=b1, w2=w2, b2=b2, wo=wo, bo=bo)


def pack_params(p):
    """One-time repack for the kernel: fuse Q/K, transpose the final projection."""
    return dict(
        wqk=jnp.concatenate([p["wq"], p["wk"]], axis=1),   # [D_TEXT, 2*D_MODEL]
        bqk=jnp.concatenate([p["bq"], p["bk"]], axis=1),   # [1, 2*D_MODEL]
        wv=p["wv"], bv=p["bv"],
        w1=p["w1"], b1=p["b1"], w2=p["w2"], b2=p["b2"],
        wo_row=p["wo"].T,                                  # [1, LATENT_DIM]
        bo=p["bo"],                                        # [1, 1]
    )


def _reference_forward(mol, txt, p):
    """Pure-JAX reference mirroring the PyTorch forward (for sanity check)."""
    scale = math.sqrt(D_MODEL)
    q = txt @ p["wq"] + p["bq"]
    k = txt @ p["wk"] + p["bk"]
    v = mol @ p["wv"] + p["bv"]
    attn = jax.nn.softmax((q @ k.T) / scale, axis=-1)
    fused = attn @ v
    h = jax.nn.relu(fused @ p["w1"] + p["b1"])
    h = jax.nn.relu(h @ p["w2"] + p["b2"])
    val = h @ p["wo"] + p["bo"]
    # softplus (stable form of log(1 + exp(x)))
    return jnp.sum(jnp.maximum(val, 0.0) + jnp.log1p(jnp.exp(-jnp.abs(val))))


if __name__ == "__main__":
    key = jax.random.PRNGKey(0)
    k_mol, k_txt, k_par = jax.random.split(key, 3)

    NUM_PAIRS = 4   # amortize launch overhead: 4 forward passes in one pallas_call
    mols = jax.random.normal(k_mol, (NUM_PAIRS, B, D_MOLECULE), jnp.float32)
    txts = jax.random.normal(k_txt, (NUM_PAIRS, B, D_TEXT), jnp.float32)
    params = init_params(k_par)
    packed = pack_params(params)

    # Batched path: one kernel launch, grid=(NUM_PAIRS,).
    vals = jax.block_until_ready(fusion_model_forward_batched(mols, txts, packed))
    refs = jnp.stack([_reference_forward(mols[i], txts[i], params)
                      for i in range(NUM_PAIRS)])
    # Tolerance slightly loosened for pl.reciprocal(approx=True) in the softmax.
    assert jnp.allclose(vals, refs, rtol=1e-3, atol=5e-3), (vals, refs)

    # Single-pair path: identical semantics to FusionModel.forward(mol, txt).
    single = jax.block_until_ready(fusion_model_forward(mols[0], txts[0], packed))
    assert jnp.allclose(single, refs[0], rtol=1e-3, atol=5e-3), (single, refs[0])

    print("KERNEL_OK")
</pallas_src>

<mosaic_0001>
module attributes {stable_mosaic.version = 11 : i64} {
  func.func @_fusion_kernel(%arg0: i32, %arg1: memref<1x8x16xf32, #tpu.memory_space<vmem>>, %arg2: memref<1x8x24xf32, #tpu.memory_space<vmem>>, %arg3: memref<24x64xf32, #tpu.memory_space<vmem>>, %arg4: memref<1x64xf32, #tpu.memory_space<vmem>>, %arg5: memref<16x32xf32, #tpu.memory_space<vmem>>, %arg6: memref<1x32xf32, #tpu.memory_space<vmem>>, %arg7: memref<32x32xf32, #tpu.memory_space<vmem>>, %arg8: memref<1x32xf32, #tpu.memory_space<vmem>>, %arg9: memref<32x32xf32, #tpu.memory_space<vmem>>, %arg10: memref<1x32xf32, #tpu.memory_space<vmem>>, %arg11: memref<1x32xf32, #tpu.memory_space<vmem>>, %arg12: memref<1x1xf32, #tpu.memory_space<vmem>>, %arg13: memref<1x8x128xf32, #tpu.memory_space<vmem>>) attributes {dimension_semantics = [#tpu.dimension_semantics<parallel>], iteration_bounds = array<i64: 4>, scalar_prefetch = 0 : i64, scratch_operands = 0 : i64, tpu.core_type = #tpu.core_type<tc>, window_params = [{transform_indices = @transform_0, window_bounds = array<i64: 1, 8, 16>}, {transform_indices = @transform_1, window_bounds = array<i64: 1, 8, 24>}, {pipeline_mode = #tpu.pipeline_mode<synchronous>, transform_indices = @transform_2, window_bounds = array<i64: 24, 64>}, {pipeline_mode = #tpu.pipeline_mode<synchronous>, transform_indices = @transform_3, window_bounds = array<i64: 1, 64>}, {pipeline_mode = #tpu.pipeline_mode<synchronous>, transform_indices = @transform_4, window_bounds = array<i64: 16, 32>}, {pipeline_mode = #tpu.pipeline_mode<synchronous>, transform_indices = @transform_5, window_bounds = array<i64: 1, 32>}, {pipeline_mode = #tpu.pipeline_mode<synchronous>, transform_indices = @transform_6, window_bounds = array<i64: 32, 32>}, {pipeline_mode = #tpu.pipeline_mode<synchronous>, transform_indices = @transform_7, window_bounds = array<i64: 1, 32>}, {pipeline_mode = #tpu.pipeline_mode<synchronous>, transform_indices = @transform_8, window_bounds = array<i64: 32, 32>}, {pipeline_mode = #tpu.pipeline_mode<synchronous>, transform_indices = @transform_9, window_bounds = array<i64: 1, 32>}, {pipeline_mode = #tpu.pipeline_mode<synchronous>, transform_indices = @transform_10, window_bounds = array<i64: 1, 32>}, {pipeline_mode = #tpu.pipeline_mode<synchronous>, transform_indices = @transform_11, window_bounds = array<i64: 1, 1>}, {transform_indices = @transform_12, window_bounds = array<i64: 1, 8, 128>}]} {
    %c0 = arith.constant 0 : index
    %c0_0 = arith.constant 0 : index
    %c0_1 = arith.constant 0 : index
    %0 = vector.load %arg1[%c0, %c0_0, %c0_1] : memref<1x8x16xf32, #tpu.memory_space<vmem>>, vector<1x8x16xf32>
    %1 = vector.shape_cast %0 : vector<1x8x16xf32> to vector<8x16xf32>
    %c0_2 = arith.constant 0 : index
    %c0_3 = arith.constant 0 : index
    %c0_4 = arith.constant 0 : index
    %2 = vector.load %arg2[%c0_2, %c0_3, %c0_4] : memref<1x8x24xf32, #tpu.memory_space<vmem>>, vector<1x8x24xf32>
    %3 = vector.shape_cast %2 : vector<1x8x24xf32> to vector<8x24xf32>
    %c0_5 = arith.constant 0 : index
    %c0_6 = arith.constant 0 : index
    %4 = vector.load %arg3[%c0_5, %c0_6] : memref<24x64xf32, #tpu.memory_space<vmem>>, vector<24x64xf32>
    %cst = arith.constant dense<0.000000e+00> : vector<8x64xf32>
    %5 = tpu.matmul %3, %4, %cst {dimension_numbers = #tpu.dot_dimension_numbers<[1], [0], [0], [1], [0, 0, 1, 1], [], []>} : vector<8x24xf32>, vector<24x64xf32>, vector<8x64xf32> -> vector<8x64xf32>
    %c0_7 = arith.constant 0 : index
    %c0_8 = arith.constant 0 : index
    %6 = vector.load %arg4[%c0_7, %c0_8] : memref<1x64xf32, #tpu.memory_space<vmem>>, vector<1x64xf32>
    %7 = vector.broadcast %6 : vector<1x64xf32> to vector<8x64xf32>
    %8 = arith.addf %5, %7 : vector<8x64xf32>
    %9 = vector.extract_strided_slice %8 {offsets = [0, 0], sizes = [8, 32], strides = [1, 1]} : vector<8x64xf32> to vector<8x32xf32>
    %10 = vector.extract_strided_slice %8 {offsets = [0, 32], sizes = [8, 32], strides = [1, 1]} : vector<8x64xf32> to vector<8x32xf32>
    %c0_9 = arith.constant 0 : index
    %c0_10 = arith.constant 0 : index
    %11 = vector.load %arg5[%c0_9, %c0_10] : memref<16x32xf32, #tpu.memory_space<vmem>>, vector<16x32xf32>
    %cst_11 = arith.constant dense<0.000000e+00> : vector<8x32xf32>
    %12 = tpu.matmul %1, %11, %cst_11 {dimension_numbers = #tpu.dot_dimension_numbers<[1], [0], [0], [1], [0, 0, 1, 1], [], []>} : vector<8x16xf32>, vector<16x32xf32>, vector<8x32xf32> -> vector<8x32xf32>
    %c0_12 = arith.constant 0 : index
    %c0_13 = arith.constant 0 : index
    %13 = vector.load %arg6[%c0_12, %c0_13] : memref<1x32xf32, #tpu.memory_space<vmem>>, vector<1x32xf32>
    %14 = vector.broadcast %13 : vector<1x32xf32> to vector<8x32xf32>
    %15 = arith.addf %12, %14 : vector<8x32xf32>
    %cst_14 = arith.constant dense<0.000000e+00> : vector<8x8xf32>
    %16 = tpu.matmul %9, %10, %cst_14 {dimension_numbers = #tpu.dot_dimension_numbers<[1], [1], [0], [0], [0, 0, 1, 0], [], []>} : vector<8x32xf32>, vector<8x32xf32>, vector<8x8xf32> -> vector<8x8xf32>
    %cst_15 = arith.constant 0.176776692 : f32
    %17 = vector.broadcast %cst_15 : f32 to vector<8x8xf32>
    %18 = arith.mulf %16, %17 : vector<8x8xf32>
    %cst_16 = arith.constant dense<0xFF800000> : vector<8xf32>
    %19 = vector.multi_reduction <maximumf>, %18, %cst_16 [1] : vector<8x8xf32> to vector<8xf32>
    %20 = vector.shape_cast %19 : vector<8xf32> to vector<8x1xf32>
    %21 = vector.broadcast %20 : vector<8x1xf32> to vector<8x8xf32>
    %22 = arith.subf %18, %21 : vector<8x8xf32>
    %23 = math.exp %22 : vector<8x8xf32>
    %cst_17 = arith.constant dense<0.000000e+00> : vector<8xf32>
    %24 = vector.multi_reduction <add>, %23, %cst_17 [1] : vector<8x8xf32> to vector<8xf32>
    %25 = vector.shape_cast %24 : vector<8xf32> to vector<8x1xf32>
    %26 = tpu.reciprocal %25 {approx = true} : vector<8x1xf32> -> vector<8x1xf32>
    %27 = vector.broadcast %26 : vector<8x1xf32> to vector<8x8xf32>
    %28 = arith.mulf %23, %27 : vector<8x8xf32>
    %cst_18 = arith.constant dense<0.000000e+00> : vector<8x32xf32>
    %29 = tpu.matmul %28, %15, %cst_18 {dimension_numbers = #tpu.dot_dimension_numbers<[1], [0], [0], [1], [0, 0, 1, 1], [], []>} : vector<8x8xf32>, vector<8x32xf32>, vector<8x32xf32> -> vector<8x32xf32>
    %c0_19 = arith.constant 0 : index
    %c0_20 = arith.constant 0 : index
    %30 = vector.load %arg7[%c0_19, %c0_20] : memref<32x32xf32, #tpu.memory_space<vmem>>, vector<32x32xf32>
    %cst_21 = arith.constant dense<0.000000e+00> : vector<8x32xf32>
    %31 = tpu.matmul %29, %30, %cst_21 {dimension_numbers = #tpu.dot_dimension_numbers<[1], [0], [0], [1], [0, 0, 1, 1], [], []>} : vector<8x32xf32>, vector<32x32xf32>, vector<8x32xf32> -> vector<8x32xf32>
    %c0_22 = arith.constant 0 : index
    %c0_23 = arith.constant 0 : index
    %32 = vector.load %arg8[%c0_22, %c0_23] : memref<1x32xf32, #tpu.memory_space<vmem>>, vector<1x32xf32>
    %33 = vector.broadcast %32 : vector<1x32xf32> to vector<8x32xf32>
    %34 = arith.addf %31, %33 : vector<8x32xf32>
    %cst_24 = arith.constant 0.000000e+00 : f32
    %35 = vector.broadcast %cst_24 : f32 to vector<8x32xf32>
    %36 = arith.maximumf %34, %35 : vector<8x32xf32>
    %c0_25 = arith.constant 0 : index
    %c0_26 = arith.constant 0 : index
    %37 = vector.load %arg9[%c0_25, %c0_26] : memref<32x32xf32, #tpu.memory_space<vmem>>, vector<32x32xf32>
    %cst_27 = arith.constant dense<0.000000e+00> : vector<8x32xf32>
    %38 = tpu.matmul %36, %37, %cst_27 {dimension_numbers = #tpu.dot_dimension_numbers<[1], [0], [0], [1], [0, 0, 1, 1], [], []>} : vector<8x32xf32>, vector<32x32xf32>, vector<8x32xf32> -> vector<8x32xf32>
    %c0_28 = arith.constant 0 : index
    %c0_29 = arith.constant 0 : index
    %39 = vector.load %arg10[%c0_28, %c0_29] : memref<1x32xf32, #tpu.memory_space<vmem>>, vector<1x32xf32>
    %40 = vector.broadcast %39 : vector<1x32xf32> to vector<8x32xf32>
    %41 = arith.addf %38, %40 : vector<8x32xf32>
    %cst_30 = arith.constant 0.000000e+00 : f32
    %42 = vector.broadcast %cst_30 : f32 to vector<8x32xf32>
    %43 = arith.maximumf %41, %42 : vector<8x32xf32>
    %c0_31 = arith.constant 0 : index
    %c0_32 = arith.constant 0 : index
    %44 = vector.load %arg11[%c0_31, %c0_32] : memref<1x32xf32, #tpu.memory_space<vmem>>, vector<1x32xf32>
    %45 = vector.broadcast %44 : vector<1x32xf32> to vector<8x32xf32>
    %46 = arith.mulf %43, %45 : vector<8x32xf32>
    %cst_33 = arith.constant dense<0.000000e+00> : vector<8xf32>
    %47 = vector.multi_reduction <add>, %46, %cst_33 [1] : vector<8x32xf32> to vector<8xf32>
    %48 = vector.shape_cast %47 : vector<8xf32> to vector<8x1xf32>
    %c0_34 = arith.constant 0 : index
    %c0_35 = arith.constant 0 : index
    %49 = vector.load %arg12[%c0_34, %c0_35] : memref<1x1xf32, #tpu.memory_space<vmem>>, vector<1x1xf32>
    %50 = vector.broadcast %49 : vector<1x1xf32> to vector<8x1xf32>
    %51 = arith.addf %48, %50 : vector<8x1xf32>
    %cst_36 = arith.constant 0.000000e+00 : f32
    %52 = vector.broadcast %cst_36 : f32 to vector<8x1xf32>
    %53 = arith.maximumf %51, %52 : vector<8x1xf32>
    %54 = math.absf %51 : vector<8x1xf32>
    %cst_37 = arith.constant 0.000000e+00 : f32
    %55 = vector.broadcast %cst_37 : f32 to vector<8x1xf32>
    %56 = arith.subf %55, %54 : vector<8x1xf32>
    %57 = math.exp %56 : vector<8x1xf32>
    %cst_38 = arith.constant 1.000000e+00 : f32
    %58 = vector.broadcast %cst_38 : f32 to vector<8x1xf32>
    %59 = arith.addf %58, %57 : vector<8x1xf32>
    %60 = math.log %59 : vector<8x1xf32>
    %61 = arith.addf %53, %60 : vector<8x1xf32>
    %62 = vector.shape_cast %61 : vector<8x1xf32> to vector<1x8x1xf32>
    %cst_39 = arith.constant dense<0.000000e+00> : vector<1xf32>
    %63 = vector.multi_reduction <add>, %62, %cst_39 [1, 2] : vector<1x8x1xf32> to vector<1xf32>
    %64 = vector.shape_cast %63 : vector<1xf32> to vector<1x1x1xf32>
    %65 = vector.extract %64[0, 0, 0] : f32 from vector<1x1x1xf32>
    %66 = vector.broadcast %65 : f32 to vector<1x8x128xf32>
    %c0_40 = arith.constant 0 : index
    %c0_41 = arith.constant 0 : index
    %c0_42 = arith.constant 0 : index
    %67 = vector.load %arg13[%c0_40, %c0_41, %c0_42] : memref<1x8x128xf32, #tpu.memory_space<vmem>>, vector<1x8x128xf32>
    tpu.vector_store %arg13[%c0_40, %c0_41, %c0_42], %66 {strides = array<i32>} : memref<1x8x128xf32, #tpu.memory_space<vmem>>, vector<1x8x128xf32>,
    return
  }
  func.func @transform_0(%arg0: i32) -> (i32, i32, i32) {
    %c0_i32 = arith.constant 0 : i32
    %c0_i32_0 = arith.constant 0 : i32
    %c0_i32_1 = arith.constant 0 : i32
    return %arg0, %c0_i32, %c0_i32_0 : i32, i32, i32
  }
  func.func @transform_1(%arg0: i32) -> (i32, i32, i32) {
    %c0_i32 = arith.constant 0 : i32
    %c0_i32_0 = arith.constant 0 : i32
    %c0_i32_1 = arith.constant 0 : i32
    return %arg0, %c0_i32, %c0_i32_0 : i32, i32, i32
  }
  func.func @transform_2(%arg0: i32) -> (i32, i32) {
    %c0_i32 = arith.constant 0 : i32
    %c0_i32_0 = arith.constant 0 : i32
    %c0_i32_1 = arith.constant 0 : i32
    return %c0_i32, %c0_i32_0 : i32, i32
  }
  func.func @transform_3(%arg0: i32) -> (i32, i32) {
    %c0_i32 = arith.constant 0 : i32
    %c0_i32_0 = arith.constant 0 : i32
    %c0_i32_1 = arith.constant 0 : i32
    return %c0_i32, %c0_i32_0 : i32, i32
  }
  func.func @transform_4(%arg0: i32) -> (i32, i32) {
    %c0_i32 = arith.constant 0 : i32
    %c0_i32_0 = arith.constant 0 : i32
    %c0_i32_1 = arith.constant 0 : i32
    return %c0_i32, %c0_i32_0 : i32, i32
  }
  func.func @transform_5(%arg0: i32) -> (i32, i32) {
    %c0_i32 = arith.constant 0 : i32
    %c0_i32_0 = arith.constant 0 : i32
    %c0_i32_1 = arith.constant 0 : i32
    return %c0_i32, %c0_i32_0 : i32, i32
  }
  func.func @transform_6(%arg0: i32) -> (i32, i32) {
    %c0_i32 = arith.constant 0 : i32
    %c0_i32_0 = arith.constant 0 : i32
    %c0_i32_1 = arith.constant 0 : i32
    return %c0_i32, %c0_i32_0 : i32, i32
  }
  func.func @transform_7(%arg0: i32) -> (i32, i32) {
    %c0_i32 = arith.constant 0 : i32
    %c0_i32_0 = arith.constant 0 : i32
    %c0_i32_1 = arith.constant 0 : i32
    return %c0_i32, %c0_i32_0 : i32, i32
  }
  func.func @transform_8(%arg0: i32) -> (i32, i32) {
    %c0_i32 = arith.constant 0 : i32
    %c0_i32_0 = arith.constant 0 : i32
    %c0_i32_1 = arith.constant 0 : i32
    return %c0_i32, %c0_i32_0 : i32, i32
  }
  func.func @transform_9(%arg0: i32) -> (i32, i32) {
    %c0_i32 = arith.constant 0 : i32
    %c0_i32_0 = arith.constant 0 : i32
    %c0_i32_1 = arith.constant 0 : i32
    return %c0_i32, %c0_i32_0 : i32, i32
  }
  func.func @transform_10(%arg0: i32) -> (i32, i32) {
    %c0_i32 = arith.constant 0 : i32
    %c0_i32_0 = arith.constant 0 : i32
    %c0_i32_1 = arith.constant 0 : i32
    return %c0_i32, %c0_i32_0 : i32, i32
  }
  func.func @transform_11(%arg0: i32) -> (i32, i32) {
    %c0_i32 = arith.constant 0 : i32
    %c0_i32_0 = arith.constant 0 : i32
    %c0_i32_1 = arith.constant 0 : i32
    return %c0_i32, %c0_i32_0 : i32, i32
  }
  func.func @transform_12(%arg0: i32) -> (i32, i32, i32) {
    %c0_i32 = arith.constant 0 : i32
    %c0_i32_0 = arith.constant 0 : i32
    %c0_i32_1 = arith.constant 0 : i32
    return %arg0, %c0_i32, %c0_i32_0 : i32, i32, i32
  }
}

</mosaic_0001>

<llo_original>
// kernel: tpu_custom_call.1
$region0: #{tpu_custom_call.1}
  #allocation0 [shape = 'u32[]', space=smem, size = 0x4, offset = 0x4, fixed_abs, tag = 'smem constant byte address 0x4 - core index']
  #allocation1 [shape = 'u32[144,128]{1,0:T(1,128)}', space=vmem, size = 0x12000, scoped, tag = 'internal scratch']
  #allocation2 [shape = 'f32[1,1]{1,0:T(1,128)S(1)}', space=vmem, size = 0x200, scoped, tag = 'scoped memory for tpu_custom_call.1']
  %s0 = inlined_call_operand.hbm [shape: f32[4,8,16], index: 0, kind: input, shape index: {}]
  %s1 = inlined_call_operand.hbm [shape: f32[4,8,24], index: 1, kind: input, shape index: {}]
  %s2 = inlined_call_operand.hbm [shape: f32[24,64], index: 2, kind: input, shape index: {}]
  %s3 = inlined_call_operand.vmem [shape: f32[1,64], index: 3, kind: input, shape index: {}]
  %s4 = inlined_call_operand.hbm [shape: f32[16,32], index: 4, kind: input, shape index: {}]
  %s5 = inlined_call_operand.vmem [shape: f32[1,32], index: 5, kind: input, shape index: {}]
  %s6 = inlined_call_operand.hbm [shape: f32[32,32], index: 6, kind: input, shape index: {}]
  %s7 = inlined_call_operand.vmem [shape: f32[1,32], index: 7, kind: input, shape index: {}]
  %s8 = inlined_call_operand.hbm [shape: f32[32,32], index: 8, kind: input, shape index: {}]
  %s9 = inlined_call_operand.vmem [shape: f32[1,32], index: 9, kind: input, shape index: {}]
  %s10 = inlined_call_operand.vmem [shape: f32[1,32], index: 10, kind: input, shape index: {}]
  %s11 = inlined_call_operand.<no memory space> [shape: f32[1,1], index: 11, kind: input, shape index: {}]
  %s12 = inlined_call_operand.hbm [shape: f32[4,8,128], index: 12, kind: output, shape index: {}]
  %s13 = sld [smem:[#allocation0]]
  $region105: #{tpu_custom_call.1} parent=0
    _
  %s15 = ssub.s32 1, %s13
  %s16 = scalar_select 0, %s15, %s13
  %v17 = vstv %s11
  %18 = vst [vmem:[#allocation2] sm:$0x1] %v17
  $region1: #{tpu_custom_call.1} parent=0
    #allocation3 [shape = 'u8[8192]{0}', space=vmem, size = 0x2000, scoped, tag = 'input window, operand 0']
    #allocation4 [shape = 's32[2]{0}', space=sflag, size = 0x8, scoped, tag = 'scoped memory for tpu_custom_call.1']
    #allocation5 [shape = 's32[2]{0}', space=sflag, size = 0x8, scoped, tag = 'scoped memory for tpu_custom_call.1']
    #allocation6 [shape = 'u8[8192]{0}', space=vmem, size = 0x2000, scoped, tag = 'input window, operand 1']
    #allocation7 [shape = 's32[2]{0}', space=sflag, size = 0x8, scoped, tag = 'scoped memory for tpu_custom_call.1']
    #allocation8 [shape = 'u8[12288]{0}', space=vmem, size = 0x3000, scoped, tag = 'input window, operand 2, single buffered']
    #allocation9 [shape = 'u8[8192]{0}', space=vmem, size = 0x2000, scoped, tag = 'input window, operand 4, single buffered']
    #allocation10 [shape = 's32[1]{0}', space=sflag, size = 0x4, scoped, tag = 'scoped memory for tpu_custom_call.1']
    #allocation11 [shape = 'u8[16384]{0}', space=vmem, size = 0x4000, scoped, tag = 'input window, operand 6, single buffered']
    #allocation12 [shape = 'u8[16384]{0}', space=vmem, size = 0x4000, scoped, tag = 'input window, operand 8, single buffered']
    #allocation13 [shape = 's32[1]{0}', space=sflag, size = 0x4, scoped, tag = 'scoped memory for tpu_custom_call.1']
    #allocation14 [shape = 'u8[8192]{0}', space=vmem, size = 0x2000, scoped, tag = 'output window, operand 0']
    %19 = vsyncpa [#allocation4], 0
    %s20 = scalar_lea.sflag [#allocation4], 1
    %21 = vsyncpa %s20, 0
    %22 = vsyncpa [#allocation7], 0
    %s23 = scalar_lea.sflag [#allocation7], 1
    %24 = vsyncpa %s23, 0
    %25 = vsyncpa [#allocation10], 0
    %26 = vsyncpa [#allocation13], 0
    %27 = vsyncpa [#allocation5], 0
    %s28 = scalar_lea.sflag [#allocation5], 1
    %29 = vsyncpa %s28, 0
    loop: start=0, step=1, limit=6
    $region2: #{tpu_custom_call.1} parent=1 // loop_pre_header
      _
    $region3: #{tpu_custom_call.1} parent=1 // loop_header
      %s31 = sphi 0, %s35
      %p32 = scmp.ge.s32.totalorder %s31, 6
      %s41 = sphi 0, %s43
      %s44 = sphi 0, %s41
      %s45 = sphi 0, %s44
      %s61 = sphi 0, %s45
      %s67 = sphi 0, %s69
      %s70 = sphi 0, %s67
      %s71 = sphi 0, %s70
      %s87 = sphi 0, %s71
      %s91 = sphi 0, %s91
      %s93 = sphi 0, %s91
      %s94 = sphi 0, %s93
      %s108 = sphi 0, %s94
      %s112 = sphi 0, %s112
      %s114 = sphi 0, %s112
      %s115 = sphi 0, %s114
      %s129 = sphi 0, %s115
      %s133 = sphi 0, %s133
      %s135 = sphi 0, %s133
      %s136 = sphi 0, %s135
      %s150 = sphi 0, %s136
      %s154 = sphi 0, %s154
      %s156 = sphi 0, %s154
      %s157 = sphi 0, %s156
      %s171 = sphi 0, %s157
      %s175 = sphi 0, %s175
      %s177 = sphi 0, %s175
      %s178 = sphi 0, %s177
      %s192 = sphi 0, %s178
      %s196 = sphi 0, %s196
      %s198 = sphi 0, %s196
      %s199 = sphi 0, %s198
      %s213 = sphi 0, %s199
      %s217 = sphi 0, %s217
      %s219 = sphi 0, %s217
      %s220 = sphi 0, %s219
      %s234 = sphi 0, %s220
      %s238 = sphi 0, %s238
      %s240 = sphi 0, %s238
      %s241 = sphi 0, %s240
      %s255 = sphi 0, %s241
      %s259 = sphi 0, %s259
      %s261 = sphi 0, %s259
      %s262 = sphi 0, %s261
      %s276 = sphi 0, %s262
      %s280 = sphi 0, %s280
      %s282 = sphi 0, %s280
      %s283 = sphi 0, %s282
      %s297 = sphi 0, %s283
      %s303 = sphi 0, %s305
      %s306 = sphi 0, %s303
      %s307 = sphi 0, %s306
      %s323 = sphi 0, %s307
    $region4: #{tpu_custom_call.1} parent=1 // loop_header_branch
      %34 = sbr.rel (%p32) target = $region8
    $region5: #{tpu_custom_call.1} parent=1 // loop_body
      %s36 = ssub.s32 %s31, 1
      %s37 = ssub.s32 %s31, 2
      %s38 = sadd.s32 %s31, 1
      %s39 = ssub.s32 %s31, %s38
      %p40 = scmp.eq.s32.totalorder %s39, 0
      %s42 = sadd.s32 %s41, 1
      %s43 = scalar_select %p40, %s41, %s42
      %p46 = pneg %p40
      %p47 = scmp.eq.s32.totalorder %s31, 3
      %p48 = por %p46, %p47
      %p49 = scmp.ne.s32.totalorder %s41, %s44
      %p50 = scmp.eq.s32.totalorder %s31, 0
      %p51 = por %p49, %p50
      %p52 = scmp.ne.s32.totalorder %s41, %s44
      %p53 = scmp.eq.s32.totalorder %s36, 3
      %p54 = por %p52, %p53
      %p55 = scmp.ne.s32.totalorder %s44, %s45
      %p56 = scmp.eq.s32.totalorder %s36, 0
      %p57 = por %p55, %p56
      %p58 = scmp.ne.s32.totalorder %s44, %s45
      %p59 = scmp.eq.s32.totalorder %s37, 3
      %p60 = por %p58, %p59
      %p62 = scmp.ne.s32.totalorder %s45, %s61
      %p63 = scmp.eq.s32.totalorder %s37, 0
      %p64 = por %p62, %p63
      %s65 = ssub.s32 %s31, %s38
      %p66 = scmp.eq.s32.totalorder %s65, 0
      %s68 = sadd.s32 %s67, 1
      %s69 = scalar_select %p66, %s67, %s68
      %p72 = pneg %p66
      %p73 = scmp.eq.s32.totalorder %s31, 3
      %p74 = por %p72, %p73
      %p75 = scmp.ne.s32.totalorder %s67, %s70
      %p76 = scmp.eq.s32.totalorder %s31, 0
      %p77 = por %p75, %p76
      %p78 = scmp.ne.s32.totalorder %s67, %s70
      %p79 = scmp.eq.s32.totalorder %s36, 3
      %p80 = por %p78, %p79
      %p81 = scmp.ne.s32.totalorder %s70, %s71
      %p82 = scmp.eq.s32.totalorder %s36, 0
      %p83 = por %p81, %p82
      %p84 = scmp.ne.s32.totalorder %s70, %s71
      %p85 = scmp.eq.s32.totalorder %s37, 3
      %p86 = por %p84, %p85
      %p88 = scmp.ne.s32.totalorder %s71, %s87
      %p89 = scmp.eq.s32.totalorder %s37, 0
      %p90 = por %p88, %p89
      %s92 = sadd.s32 %s91, 1
      %p95 = scmp.eq.s32.totalorder %s31, 3
      %p96 = scmp.ne.s32.totalorder %s91, %s93
      %p97 = scmp.eq.s32.totalorder %s31, 0
      %p98 = por %p96, %p97
      %p99 = scmp.ne.s32.totalorder %s91, %s93
      %p100 = scmp.eq.s32.totalorder %s36, 3
      %p101 = por %p99, %p100
      %p102 = scmp.ne.s32.totalorder %s93, %s94
      %p103 = scmp.eq.s32.totalorder %s36, 0
      %p104 = por %p102, %p103
      %p105 = scmp.ne.s32.totalorder %s93, %s94
      %p106 = scmp.eq.s32.totalorder %s37, 3
      %p107 = por %p105, %p106
      %p109 = scmp.ne.s32.totalorder %s94, %s108
      %p110 = scmp.eq.s32.totalorder %s37, 0
      %p111 = por %p109, %p110
      %s113 = sadd.s32 %s112, 1
      %p116 = scmp.eq.s32.totalorder %s31, 3
      %p117 = scmp.ne.s32.totalorder %s112, %s114
      %p118 = scmp.eq.s32.totalorder %s31, 0
      %p119 = por %p117, %p118
      %p120 = scmp.ne.s32.totalorder %s112, %s114
      %p121 = scmp.eq.s32.totalorder %s36, 3
      %p122 = por %p120, %p121
      %p123 = scmp.ne.s32.totalorder %s114, %s115
      %p124 = scmp.eq.s32.totalorder %s36, 0
      %p125 = por %p123, %p124
      %p126 = scmp.ne.s32.totalorder %s114, %s115
      %p127 = scmp.eq.s32.totalorder %s37, 3
      %p128 = por %p126, %p127
      %p130 = scmp.ne.s32.totalorder %s115, %s129
      %p131 = scmp.eq.s32.totalorder %s37, 0
      %p132 = por %p130, %p131
      %s134 = sadd.s32 %s133, 1
      %p137 = scmp.eq.s32.totalorder %s31, 3
      %p138 = scmp.ne.s32.totalorder %s133, %s135
      %p139 = scmp.eq.s32.totalorder %s31, 0
      %p140 = por %p138, %p139
      %p141 = scmp.ne.s32.totalorder %s133, %s135
      %p142 = scmp.eq.s32.totalorder %s36, 3
      %p143 = por %p141, %p142
      %p144 = scmp.ne.s32.totalorder %s135, %s136
      %p145 = scmp.eq.s32.totalorder %s36, 0
      %p146 = por %p144, %p145
      %p147 = scmp.ne.s32.totalorder %s135, %s136
      %p148 = scmp.eq.s32.totalorder %s37, 3
      %p149 = por %p147, %p148
      %p151 = scmp.ne.s32.totalorder %s136, %s150
      %p152 = scmp.eq.s32.totalorder %s37, 0
      %p153 = por %p151, %p152
      %s155 = sadd.s32 %s154, 1
      %p158 = scmp.eq.s32.totalorder %s31, 3
      %p159 = scmp.ne.s32.totalorder %s154, %s156
      %p160 = scmp.eq.s32.totalorder %s31, 0
      %p161 = por %p159, %p160
      %p162 = scmp.ne.s32.totalorder %s154, %s156
      %p163 = scmp.eq.s32.totalorder %s36, 3
      %p164 = por %p162, %p163
      %p165 = scmp.ne.s32.totalorder %s156, %s157
      %p166 = scmp.eq.s32.totalorder %s36, 0
      %p167 = por %p165, %p166
      %p168 = scmp.ne.s32.totalorder %s156, %s157
      %p169 = scmp.eq.s32.totalorder %s37, 3
      %p170 = por %p168, %p169
      %p172 = scmp.ne.s32.totalorder %s157, %s171
      %p173 = scmp.eq.s32.totalorder %s37, 0
      %p174 = por %p172, %p173
      %s176 = sadd.s32 %s175, 1
      %p179 = scmp.eq.s32.totalorder %s31, 3
      %p180 = scmp.ne.s32.totalorder %s175, %s177
      %p181 = scmp.eq.s32.totalorder %s31, 0
      %p182 = por %p180, %p181
      %p183 = scmp.ne.s32.totalorder %s175, %s177
      %p184 = scmp.eq.s32.totalorder %s36, 3
      %p185 = por %p183, %p184
      %p186 = scmp.ne.s32.totalorder %s177, %s178
      %p187 = scmp.eq.s32.totalorder %s36, 0
      %p188 = por %p186, %p187
      %p189 = scmp.ne.s32.totalorder %s177, %s178
      %p190 = scmp.eq.s32.totalorder %s37, 3
      %p191 = por %p189, %p190
      %p193 = scmp.ne.s32.totalorder %s178, %s192
      %p194 = scmp.eq.s32.totalorder %s37, 0
      %p195 = por %p193, %p194
      %s197 = sadd.s32 %s196, 1
      %p200 = scmp.eq.s32.totalorder %s31, 3
      %p201 = scmp.ne.s32.totalorder %s196, %s198
      %p202 = scmp.eq.s32.totalorder %s31, 0
      %p203 = por %p201, %p202
      %p204 = scmp.ne.s32.totalorder %s196, %s198
      %p205 = scmp.eq.s32.totalorder %s36, 3
      %p206 = por %p204, %p205
      %p207 = scmp.ne.s32.totalorder %s198, %s199
      %p208 = scmp.eq.s32.totalorder %s36, 0
      %p209 = por %p207, %p208
      %p210 = scmp.ne.s32.totalorder %s198, %s199
      %p211 = scmp.eq.s32.totalorder %s37, 3
      %p212 = por %p210, %p211
      %p214 = scmp.ne.s32.totalorder %s199, %s213
      %p215 = scmp.eq.s32.totalorder %s37, 0
      %p216 = por %p214, %p215
      %s218 = sadd.s32 %s217, 1
      %p221 = scmp.eq.s32.totalorder %s31, 3
      %p222 = scmp.ne.s32.totalorder %s217, %s219
      %p223 = scmp.eq.s32.totalorder %s31, 0
      %p224 = por %p222, %p223
      %p225 = scmp.ne.s32.totalorder %s217, %s219
      %p226 = scmp.eq.s32.totalorder %s36, 3
      %p227 = por %p225, %p226
      %p228 = scmp.ne.s32.totalorder %s219, %s220
      %p229 = scmp.eq.s32.totalorder %s36, 0
      %p230 = por %p228, %p229
      %p231 = scmp.ne.s32.totalorder %s219, %s220
      %p232 = scmp.eq.s32.totalorder %s37, 3
      %p233 = por %p231, %p232
      %p235 = scmp.ne.s32.totalorder %s220, %s234
      %p236 = scmp.eq.s32.totalorder %s37, 0
      %p237 = por %p235, %p236
      %s239 = sadd.s32 %s238, 1
      %p242 = scmp.eq.s32.totalorder %s31, 3
      %p243 = scmp.ne.s32.totalorder %s238, %s240
      %p244 = scmp.eq.s32.totalorder %s31, 0
      %p245 = por %p243, %p244
      %p246 = scmp.ne.s32.totalorder %s238, %s240
      %p247 = scmp.eq.s32.totalorder %s36, 3
      %p248 = por %p246, %p247
      %p249 = scmp.ne.s32.totalorder %s240, %s241
      %p250 = scmp.eq.s32.totalorder %s36, 0
      %p251 = por %p249, %p250
      %p252 = scmp.ne.s32.totalorder %s240, %s241
      %p253 = scmp.eq.s32.totalorder %s37, 3
      %p254 = por %p252, %p253
      %p256 = scmp.ne.s32.totalorder %s241, %s255
      %p257 = scmp.eq.s32.totalorder %s37, 0
      %p258 = por %p256, %p257
      %s260 = sadd.s32 %s259, 1
      %p263 = scmp.eq.s32.totalorder %s31, 3
      %p264 = scmp.ne.s32.totalorder %s259, %s261
      %p265 = scmp.eq.s32.totalorder %s31, 0
      %p266 = por %p264, %p265
      %p267 = scmp.ne.s32.totalorder %s259, %s261
      %p268 = scmp.eq.s32.totalorder %s36, 3
      %p269 = por %p267, %p268
      %p270 = scmp.ne.s32.totalorder %s261, %s262
      %p271 = scmp.eq.s32.totalorder %s36, 0
      %p272 = por %p270, %p271
      %p273 = scmp.ne.s32.totalorder %s261, %s262
      %p274 = scmp.eq.s32.totalorder %s37, 3
      %p275 = por %p273, %p274
      %p277 = scmp.ne.s32.totalorder %s262, %s276
      %p278 = scmp.eq.s32.totalorder %s37, 0
      %p279 = por %p277, %p278
      %s281 = sadd.s32 %s280, 1
      %p284 = scmp.eq.s32.totalorder %s31, 3
      %p285 = scmp.ne.s32.totalorder %s280, %s282
      %p286 = scmp.eq.s32.totalorder %s31, 0
      %p287 = por %p285, %p286
      %p288 = scmp.ne.s32.totalorder %s280, %s282
      %p289 = scmp.eq.s32.totalorder %s36, 3
      %p290 = por %p288, %p289
      %p291 = scmp.ne.s32.totalorder %s282, %s283
      %p292 = scmp.eq.s32.totalorder %s36, 0
      %p293 = por %p291, %p292
      %p294 = scmp.ne.s32.totalorder %s282, %s283
      %p295 = scmp.eq.s32.totalorder %s37, 3
      %p296 = por %p294, %p295
      %p298 = scmp.ne.s32.totalorder %s283, %s297
      %p299 = scmp.eq.s32.totalorder %s37, 0
      %p300 = por %p298, %p299
      %s301 = ssub.s32 %s31, %s38
      %p302 = scmp.eq.s32.totalorder %s301, 0
      %s304 = sadd.s32 %s303, 1
      %s305 = scalar_select %p302, %s303, %s304
      %p308 = pneg %p302
      %p309 = scmp.eq.s32.totalorder %s31, 3
      %p310 = por %p308, %p309
      %p311 = scmp.ne.s32.totalorder %s303, %s306
      %p312 = scmp.eq.s32.totalorder %s31, 0
      %p313 = por %p311, %p312
      %p314 = scmp.ne.s32.totalorder %s303, %s306
      %p315 = scmp.eq.s32.totalorder %s36, 3
      %p316 = por %p314, %p315
      %p317 = scmp.ne.s32.totalorder %s306, %s307
      %p318 = scmp.eq.s32.totalorder %s36, 0
      %p319 = por %p317, %p318
      %p320 = scmp.ne.s32.totalorder %s306, %s307
      %p321 = scmp.eq.s32.totalorder %s37, 3
      %p322 = por %p320, %p321
      %p324 = scmp.ne.s32.totalorder %s307, %s323
      %p325 = scmp.eq.s32.totalorder %s37, 0
      %p326 = por %p324, %p325
      %p327 = scmp.le.s32.totalorder 1, %s31
      %p328 = scmp.lt.s32.totalorder %s31, 5
      %p329 = pnand %p327, %p328
      %p330 = pneg %p329
      // Predicated region
      $region9: #{tpu_custom_call.1} parent=5 // pred_check
        _
      $region10: #{tpu_custom_call.1} parent=5 // pred_check_branch
        %332 = sbr.rel (%p329) target = $region12
      $region11: #{tpu_custom_call.1} parent=5 // pred_region
        %s333 = ssub.s32 %s31, 1
        // Predicated region
        $region13: #{tpu_custom_call.1} parent=11 // pred_check
          %p334 = pneg %p104
        $region14: #{tpu_custom_call.1} parent=11 // pred_check_branch
          %336 = sbr.rel (%p334) target = $region16
        $region15: #{tpu_custom_call.1} parent=11 // pred_region
          %s338 = ssub.s32 384, 384
          %339 = vsyncadd [#allocation7], %s338
          %s340 = sshll.u32 [#allocation8], 4
          %s341 = int_to_ptr.vmem [resolvable:$true] %s340
          %346 = dma.hbm_to_vmem [thread:$0]  %s2, 384, %s341, [#allocation7], 128, 128, 8
        $region16: #{tpu_custom_call.1} parent=11 // pred_fallthru
          _
        // Predicated region
        $region17: #{tpu_custom_call.1} parent=11 // pred_check
          %p347 = pneg %p125
        $region18: #{tpu_custom_call.1} parent=11 // pred_check_branch
          %349 = sbr.rel (%p347) target = $region20
        $region19: #{tpu_custom_call.1} parent=11 // pred_region
          _
        $region20: #{tpu_custom_call.1} parent=11 // pred_fallthru
          _
        // Predicated region
        $region21: #{tpu_custom_call.1} parent=11 // pred_check
          %p350 = pneg %p146
        $region22: #{tpu_custom_call.1} parent=11 // pred_check_branch
          %352 = sbr.rel (%p350) target = $region24
        $region23: #{tpu_custom_call.1} parent=11 // pred_region
          %s354 = ssub.s32 256, 256
          %355 = vsyncadd [#allocation10], %s354
          %s356 = sshll.u32 [#allocation9], 4
          %s357 = int_to_ptr.vmem [resolvable:$true] %s356
          %362 = dma.hbm_to_vmem [thread:$0]  %s4, 256, %s357, [#allocation10], 128, 128, 8
        $region24: #{tpu_custom_call.1} parent=11 // pred_fallthru
          _
        // Predicated region
        $region25: #{tpu_custom_call.1} parent=11 // pred_check
          %p363 = pneg %p167
        $region26: #{tpu_custom_call.1} parent=11 // pred_check_branch
          %365 = sbr.rel (%p363) target = $region28
        $region27: #{tpu_custom_call.1} parent=11 // pred_region
          _
        $region28: #{tpu_custom_call.1} parent=11 // pred_fallthru
          _
        // Predicated region
        $region29: #{tpu_custom_call.1} parent=11 // pred_check
          %p366 = pneg %p188
        $region30: #{tpu_custom_call.1} parent=11 // pred_check_branch
          %368 = sbr.rel (%p366) target = $region32
        $region31: #{tpu_custom_call.1} parent=11 // pred_region
          %s370 = ssub.s32 512, 512
          %371 = vsyncadd [#allocation10], %s370
          %s372 = sshll.u32 [#allocation11], 4
          %s373 = int_to_ptr.vmem [resolvable:$true] %s372
          %378 = dma.hbm_to_vmem [thread:$0]  %s6, 512, %s373, [#allocation10], 128, 128, 8
        $region32: #{tpu_custom_call.1} parent=11 // pred_fallthru
          _
        // Predicated region
        $region33: #{tpu_custom_call.1} parent=11 // pred_check
          %p379 = pneg %p209
        $region34: #{tpu_custom_call.1} parent=11 // pred_check_branch
          %381 = sbr.rel (%p379) target = $region36
        $region35: #{tpu_custom_call.1} parent=11 // pred_region
          _
        $region36: #{tpu_custom_call.1} parent=11 // pred_fallthru
          _
        // Predicated region
        $region37: #{tpu_custom_call.1} parent=11 // pred_check
          %p382 = pneg %p230
        $region38: #{tpu_custom_call.1} parent=11 // pred_check_branch
          %384 = sbr.rel (%p382) target = $region40
        $region39: #{tpu_custom_call.1} parent=11 // pred_region
          %s386 = ssub.s32 512, 512
          %387 = vsyncadd [#allocation13], %s386
          %s388 = sshll.u32 [#allocation12], 4
          %s389 = int_to_ptr.vmem [resolvable:$true] %s388
          %394 = dma.hbm_to_vmem [thread:$0]  %s8, 512, %s389, [#allocation13], 128, 128, 8
        $region40: #{tpu_custom_call.1} parent=11 // pred_fallthru
          _
        // Predicated region
        $region41: #{tpu_custom_call.1} parent=11 // pred_check
          %p395 = pneg %p251
        $region42: #{tpu_custom_call.1} parent=11 // pred_check_branch
          %397 = sbr.rel (%p395) target = $region44
        $region43: #{tpu_custom_call.1} parent=11 // pred_region
          _
        $region44: #{tpu_custom_call.1} parent=11 // pred_fallthru
          _
        // Predicated region
        $region45: #{tpu_custom_call.1} parent=11 // pred_check
          %p398 = pneg %p272
        $region46: #{tpu_custom_call.1} parent=11 // pred_check_branch
          %400 = sbr.rel (%p398) target = $region48
        $region47: #{tpu_custom_call.1} parent=11 // pred_region
          _
        $region48: #{tpu_custom_call.1} parent=11 // pred_fallthru
          _
        // Predicated region
        $region49: #{tpu_custom_call.1} parent=11 // pred_check
          %p401 = pneg %p293
        $region50: #{tpu_custom_call.1} parent=11 // pred_check_branch
          %403 = sbr.rel (%p401) target = $region52
        $region51: #{tpu_custom_call.1} parent=11 // pred_region
          _
        $region52: #{tpu_custom_call.1} parent=11 // pred_fallthru
          _
      $region12: #{tpu_custom_call.1} parent=5 // pred_fallthru
        _
      %p404 = scmp.lt.s32.totalorder %s31, 4
      // Predicated region
      $region53: #{tpu_custom_call.1} parent=5 // pred_check
        %p405 = pneg %p404
      $region54: #{tpu_custom_call.1} parent=5 // pred_check_branch
        %407 = sbr.rel (%p405) target = $region56
      $region55: #{tpu_custom_call.1} parent=5 // pred_region
        // Predicated region
        $region57: #{tpu_custom_call.1} parent=55 // pred_check
          %p408 = pneg %p51
        $region58: #{tpu_custom_call.1} parent=55 // pred_check_branch
          %410 = sbr.rel (%p408) target = $region60
        $region59: #{tpu_custom_call.1} parent=55 // pred_region
          %s411 = sand.u32 %s41, 1
          %s412 = scalar_lea.sflag [#allocation4], %s411
          %s413 = sand.u32 %s41, 1
          %s414 = smul.addr %s413, 8
          %s415 = scalar_lea.vmem [#allocation3], %s414
          %s417 = ssub.s32 128, 128
          %418 = vsyncadd %s412, %s417
          %s419 = smul.addr %s31, 128
          %s420 = scalar_lea.hbm %s0, %s419
          %s422 = sshll.u32 %s415, 4
          %s423 = int_to_ptr.vmem [resolvable:$true] %s422
          %425 = dma.hbm_to_vmem [thread:$0]  %s420, 128, %s423, %s412
        $region60: #{tpu_custom_call.1} parent=55 // pred_fallthru
          _
        // Predicated region
        $region61: #{tpu_custom_call.1} parent=55 // pred_check
          %p426 = pneg %p77
        $region62: #{tpu_custom_call.1} parent=55 // pred_check_branch
          %428 = sbr.rel (%p426) target = $region64
        $region63: #{tpu_custom_call.1} parent=55 // pred_region
          %s429 = sand.u32 %s31, 1
          %s430 = scalar_lea.sflag [#allocation7], %s429
          %s431 = sand.u32 %s67, 1
          %s432 = smul.addr %s431, 8
          %s433 = scalar_lea.vmem [#allocation6], %s432
          %s435 = ssub.s32 128, 128
          %436 = vsyncadd %s430, %s435
          %s437 = smul.addr %s31, 128
          %s438 = scalar_lea.hbm %s1, %s437
          %s440 = sshll.u32 %s433, 4
          %s441 = int_to_ptr.vmem [resolvable:$true] %s440
          %443 = dma.hbm_to_vmem [thread:$0]  %s438, 128, %s441, %s430
        $region64: #{tpu_custom_call.1} parent=55 // pred_fallthru
          _
      $region56: #{tpu_custom_call.1} parent=5 // pred_fallthru
        _
      %p444 = scmp.le.s32.totalorder 1, %s31
      %p445 = scmp.lt.s32.totalorder %s31, 5
      %p446 = pnand %p444, %p445
      %p447 = pneg %p446
      // Predicated region
      $region65: #{tpu_custom_call.1} parent=5 // pred_check
        _
      $region66: #{tpu_custom_call.1} parent=5 // pred_check_branch
        %449 = sbr.rel (%p446) target = $region68
      $region67: #{tpu_custom_call.1} parent=5 // pred_region
        %s450 = ssub.s32 %s31, 1
        %s451 = sand.u32 %s44, 1
        %s452 = scalar_lea.sflag [#allocation4], %s451
        %s453 = sand.u32 %s44, 1
        %s454 = smul.addr %s453, 8
        %s455 = scalar_lea.vmem [#allocation3], %s454
        // Predicated region
        $region69: #{tpu_custom_call.1} parent=67 // pred_check
          %p456 = pneg %p57
        $region70: #{tpu_custom_call.1} parent=67 // pred_check_branch
          %458 = sbr.rel (%p456) target = $region72
        $region71: #{tpu_custom_call.1} parent=67 // pred_region
          %459 = dma.done %s452, 128
        $region72: #{tpu_custom_call.1} parent=67 // pred_fallthru
          _
        %s460 = sand.u32 %s36, 1
        %s461 = scalar_lea.sflag [#allocation7], %s460
        %s462 = sand.u32 %s70, 1
        %s463 = smul.addr %s462, 8
        %s464 = scalar_lea.vmem [#allocation6], %s463
        // Predicated region
        $region73: #{tpu_custom_call.1} parent=67 // pred_check
          %p465 = pneg %p83
        $region74: #{tpu_custom_call.1} parent=67 // pred_check_branch
          %467 = sbr.rel (%p465) target = $region76
        $region75: #{tpu_custom_call.1} parent=67 // pred_region
          %468 = dma.done %s461, 128
        $region76: #{tpu_custom_call.1} parent=67 // pred_fallthru
          _
        // Predicated region
        $region77: #{tpu_custom_call.1} parent=67 // pred_check
          %p469 = pneg %p104
        $region78: #{tpu_custom_call.1} parent=67 // pred_check_branch
          %471 = sbr.rel (%p469) target = $region80
        $region79: #{tpu_custom_call.1} parent=67 // pred_region
          %472 = dma.done [#allocation7], 384
        $region80: #{tpu_custom_call.1} parent=67 // pred_fallthru
          _
        // Predicated region
        $region81: #{tpu_custom_call.1} parent=67 // pred_check
          %p473 = pneg %p146
        $region82: #{tpu_custom_call.1} parent=67 // pred_check_branch
          %475 = sbr.rel (%p473) target = $region84
        $region83: #{tpu_custom_call.1} parent=67 // pred_region
          %476 = dma.done [#allocation10], 256
        $region84: #{tpu_custom_call.1} parent=67 // pred_fallthru
          _
        // Predicated region
        $region85: #{tpu_custom_call.1} parent=67 // pred_check
          %p477 = pneg %p188
        $region86: #{tpu_custom_call.1} parent=67 // pred_check_branch
          %479 = sbr.rel (%p477) target = $region88
        $region87: #{tpu_custom_call.1} parent=67 // pred_region
          %480 = dma.done [#allocation10], 512
        $region88: #{tpu_custom_call.1} parent=67 // pred_fallthru
          _
        // Predicated region
        $region89: #{tpu_custom_call.1} parent=67 // pred_check
          %p481 = pneg %p230
        $region90: #{tpu_custom_call.1} parent=67 // pred_check_branch
          %483 = sbr.rel (%p481) target = $region92
        $region91: #{tpu_custom_call.1} parent=67 // pred_region
          %484 = dma.done [#allocation13], 512
        $region92: #{tpu_custom_call.1} parent=67 // pred_fallthru
          _
        %s485 = sand.u32 %s44, 1
        %s486 = scalar_lea.sflag [#allocation4], %s485
        %s487 = sand.u32 %s44, 1
        %s488 = smul.addr %s487, 8
        %s489 = scalar_lea.vmem [#allocation3], %s488
        %p490 = pneg %p57
        %p491 = pneg %p54
        %s492 = sand.u32 %s36, 1
        %s493 = scalar_lea.sflag [#allocation7], %s492
        %s494 = sand.u32 %s70, 1
        %s495 = smul.addr %s494, 8
        %s496 = scalar_lea.vmem [#allocation6], %s495
        %p497 = pneg %p83
        %p498 = pneg %p80
        %p499 = pneg %p104
        %p500 = pneg %p101
        %p501 = pneg %p125
        %p502 = pneg %p122
        %p503 = pneg %p146
        %p504 = pneg %p143
        %p505 = pneg %p167
        %p506 = pneg %p164
        %p507 = pneg %p188
        %p508 = pneg %p185
        %p509 = pneg %p209
        %p510 = pneg %p206
        %p511 = pneg %p230
        %p512 = pneg %p227
        %p513 = pneg %p251
        %p514 = pneg %p248
        %p515 = pneg %p272
        %p516 = pneg %p269
        %p517 = pneg %p293
        %p518 = pneg %p290
        %p519 = pneg %p319
        %p520 = pneg %p316
        %s521 = sand.u32 %s306, 1
        %s522 = scalar_lea.sflag [#allocation5], %s521
        %s523 = sand.u32 %s306, 1
        %s524 = smul.addr %s523, 8
        %s525 = scalar_lea.vmem [#allocation14], %s524
        %v526 = vld [vmem:[%s455] sm:$0xff]
        %v527 = vld [vmem:[%s464] sm:$0xff]
        %v528 = vld [vmem:[#allocation8] sm:$0xff]
        %v529 = vld [vmem:[#allocation8 + $0x8] sm:$0xff]
        %v530 = vld [vmem:[#allocation8 + $0x10] sm:$0xff]
        %v531 = vld [vmem:[%s3] sm:$0x1]
        %v533 = vlaneseq
        %v534 = vshrl.u32 %v533, 7
        %v535 = vsub.s32 0, %v534
        %v536 = vrot.slane %v531, %v535
        %vm538 = vcmask 195584
        %v540 = vsel %vm538, %v527, 0
        %542 = vmatprep.subr.mxu0 0.0
        %543 = vmatpush1.msra.mxu0 0.0
        %544 = vmatprep.subr.mxu0 0.0
        %545 = vmatpush1.msra.mxu0 0.0
        %546 = vmatprep.subr.mxu0 0.0
        %547 = vmatpush1.msra.mxu0 0.0
        %548 = vmatprep.subr.mxu0 0.0
        %549 = vmatpush1.msra.mxu0 0.0
        %550 = vmatprep.subr.mxu0 0.0
        %551 = vmatpush1.msra.mxu0 0.0
        %552 = vmatprep.subr.mxu0 0.0
        %553 = vmatpush1.msra.mxu0 0.0
        %554 = vmatprep.subr.mxu0 0.0
        %555 = vmatpush1.msra.mxu0 0.0
        %556 = vmatprep.subr.mxu0 0.0
        %557 = vmatpush1.msra.mxu0 0.0
        %558 = vmatprep.subr.mxu0 0.0
        %559 = vmatpush1.msra.mxu0 0.0
        %560 = vmatprep.subr.mxu0 0.0
        %561 = vmatpush1.msra.mxu0 0.0
        %562 = vmatprep.subr.mxu0 0.0
        %563 = vmatpush1.msra.mxu0 0.0
        %564 = vmatprep.subr.mxu0 0.0
        %565 = vmatpush1.msra.mxu0 0.0
        %566 = vmatprep.subr.mxu0 0.0
        %567 = vmatpush1.msra.mxu0 0.0
        %568 = vmatprep.subr.mxu0 0.0
        %569 = vmatpush1.msra.mxu0 %v530
        %570 = vmatprep.subr.mxu0 0.0
        %571 = vmatpush1.msra.mxu0 %v529
        %572 = vmatprep.subr.mxu0 0.0
        %573 = vmatpush1.msra.mxu0 %v528
        %574 = vmatprep.subr.mxu0 0.0
        %575 = vmatpush2.msra.mxu0 0.0
        %576 = vmatprep.subr.mxu0 0.0
        %577 = vmatpush2.msra.mxu0 0.0
        %578 = vmatprep.subr.mxu0 0.0
        %579 = vmatpush2.msra.mxu0 0.0
        %580 = vmatprep.subr.mxu0 0.0
        %581 = vmatpush2.msra.mxu0 0.0
        %582 = vmatprep.subr.mxu0 0.0
        %583 = vmatpush2.msra.mxu0 0.0
        %584 = vmatprep.subr.mxu0 0.0
        %585 = vmatpush2.msra.mxu0 0.0
        %586 = vmatprep.subr.mxu0 0.0
        %587 = vmatpush2.msra.mxu0 0.0
        %588 = vmatprep.subr.mxu0 0.0
        %589 = vmatpush2.msra.mxu0 0.0
        %590 = vmatprep.subr.mxu0 0.0
        %591 = vmatpush2.msra.mxu0 0.0
        %592 = vmatprep.subr.mxu0 0.0
        %593 = vmatpush2.msra.mxu0 0.0
        %594 = vmatprep.subr.mxu0 0.0
        %595 = vmatpush2.msra.mxu0 0.0
        %596 = vmatprep.subr.mxu0 0.0
        %597 = vmatpush2.msra.mxu0 0.0
        %598 = vmatprep.subr.mxu0 0.0
        %599 = vmatpush2.msra.mxu0 0.0
        %600 = vmatprep.subr.mxu0 0.0
        %601 = vmatpush2.msra.mxu0 0.0
        %602 = vmatprep.subr.mxu0 0.0
        %603 = vmatpush2.msra.mxu0 0.0
        %604 = vmatprep.subr.mxu0 0.0
        %605 = vmatpush2.msra.mxu0 0.0
        %606 = vmatprep.mubr.f32.mxu0 0.0
        %607 = vmatmul.mubr.f32.gmra.mxu0 %v540
        %v608 = vpop.f32.mrf.mxu0
        %v609 = vadd.f32 %v536, %v608
        %v610 = vpop.f32.mrf.mxu0
        %611 = vdwg.mxu0
        %v612 = vld [vmem:[#allocation9] sm:$0xff]
        %v613 = vld [vmem:[#allocation9 + $0x8] sm:$0xff]
        %v614 = vld [vmem:[%s5] sm:$0x1]
        %v616 = vlaneseq
        %v617 = vshrl.u32 %v616, 7
        %v618 = vsub.s32 0, %v617
        %v619 = vrot.slane %v614, %v618
        %vm621 = vcmask 130048
        %v623 = vsel %vm621, %v526, 0
        %625 = vmatprep.subr.mxu0 0.0
        %626 = vmatpush1.msra.mxu0 0.0
        %627 = vmatprep.subr.mxu0 0.0
        %628 = vmatpush1.msra.mxu0 0.0
        %629 = vmatprep.subr.mxu0 0.0
        %630 = vmatpush1.msra.mxu0 0.0
        %631 = vmatprep.subr.mxu0 0.0
        %632 = vmatpush1.msra.mxu0 0.0
        %633 = vmatprep.subr.mxu0 0.0
        %634 = vmatpush1.msra.mxu0 0.0
        %635 = vmatprep.subr.mxu0 0.0
        %636 = vmatpush1.msra.mxu0 0.0
        %637 = vmatprep.subr.mxu0 0.0
        %638 = vmatpush1.msra.mxu0 0.0
        %639 = vmatprep.subr.mxu0 0.0
        %640 = vmatpush1.msra.mxu0 0.0
        %641 = vmatprep.subr.mxu0 0.0
        %642 = vmatpush1.msra.mxu0 0.0
        %643 = vmatprep.subr.mxu0 0.0
        %644 = vmatpush1.msra.mxu0 0.0
        %645 = vmatprep.subr.mxu0 0.0
        %646 = vmatpush1.msra.mxu0 0.0
        %647 = vmatprep.subr.mxu0 0.0
        %648 = vmatpush1.msra.mxu0 0.0
        %649 = vmatprep.subr.mxu0 0.0
        %650 = vmatpush1.msra.mxu0 0.0
        %651 = vmatprep.subr.mxu0 0.0
        %652 = vmatpush1.msra.mxu0 0.0
        %653 = vmatprep.subr.mxu0 0.0
        %654 = vmatpush1.msra.mxu0 %v613
        %655 = vmatprep.subr.mxu0 0.0
        %656 = vmatpush1.msra.mxu0 %v612
        %657 = vmatprep.subr.mxu0 0.0
        %658 = vmatpush2.msra.mxu0 0.0
        %659 = vmatprep.subr.mxu0 0.0
        %660 = vmatpush2.msra.mxu0 0.0
        %661 = vmatprep.subr.mxu0 0.0
        %662 = vmatpush2.msra.mxu0 0.0
        %663 = vmatprep.subr.mxu0 0.0
        %664 = vmatpush2.msra.mxu0 0.0
        %665 = vmatprep.subr.mxu0 0.0
        %666 = vmatpush2.msra.mxu0 0.0
        %667 = vmatprep.subr.mxu0 0.0
        %668 = vmatpush2.msra.mxu0 0.0
        %669 = vmatprep.subr.mxu0 0.0
        %670 = vmatpush2.msra.mxu0 0.0
        %671 = vmatprep.subr.mxu0 0.0
        %672 = vmatpush2.msra.mxu0 0.0
        %673 = vmatprep.subr.mxu0 0.0
        %674 = vmatpush2.msra.mxu0 0.0
        %675 = vmatprep.subr.mxu0 0.0
        %676 = vmatpush2.msra.mxu0 0.0
        %677 = vmatprep.subr.mxu0 0.0
        %678 = vmatpush2.msra.mxu0 0.0
        %679 = vmatprep.subr.mxu0 0.0
        %680 = vmatpush2.msra.mxu0 0.0
        %681 = vmatprep.subr.mxu0 0.0
        %682 = vmatpush2.msra.mxu0 0.0
        %683 = vmatprep.subr.mxu0 0.0
        %684 = vmatpush2.msra.mxu0 0.0
        %685 = vmatprep.subr.mxu0 0.0
        %686 = vmatpush2.msra.mxu0 0.0
        %687 = vmatprep.subr.mxu0 0.0
        %688 = vmatpush2.msra.mxu0 0.0
        %689 = vmatprep.mubr.f32.mxu0 0.0
        %690 = vmatmul.mubr.f32.gmra.mxu0 %v623
        %v691 = vpop.f32.mrf.mxu0
        %v692 = vadd.f32 %v619, %v691
        %v693 = vpop.f32.mrf.mxu0
        %694 = vdwg.mxu0
        %696 = vrot.lane.b32.xlu0 %v609, 96
        %v697 = vpop.permute.xlu0 %696
        %vm698 = vcmask 261120
        %v699 = vsel %vm698, %v609, 0
        %v701 = vsel %vm698, %v697, 0
        %703 = vmatprep.subr.mxu0 0.0
        %704 = vmatpush1.xpose.msra.mxu0 0.0
        %705 = vmatprep.subr.mxu0 0.0
        %706 = vmatpush1.xpose.msra.mxu0 0.0
        %707 = vmatprep.subr.mxu0 0.0
        %708 = vmatpush1.xpose.msra.mxu0 0.0
        %709 = vmatprep.subr.mxu0 0.0
        %710 = vmatpush1.xpose.msra.mxu0 0.0
        %711 = vmatprep.subr.mxu0 0.0
        %712 = vmatpush1.xpose.msra.mxu0 0.0
        %713 = vmatprep.subr.mxu0 0.0
        %714 = vmatpush1.xpose.msra.mxu0 0.0
        %715 = vmatprep.subr.mxu0 0.0
        %716 = vmatpush1.xpose.msra.mxu0 0.0
        %717 = vmatprep.subr.mxu0 0.0
        %718 = vmatpush1.xpose.msra.mxu0 0.0
        %719 = vmatprep.subr.mxu0 0.0
        %720 = vmatpush1.xpose.msra.mxu0 0.0
        %721 = vmatprep.subr.mxu0 0.0
        %722 = vmatpush1.xpose.msra.mxu0 0.0
        %723 = vmatprep.subr.mxu0 0.0
        %724 = vmatpush1.xpose.msra.mxu0 0.0
        %725 = vmatprep.subr.mxu0 0.0
        %726 = vmatpush1.xpose.msra.mxu0 0.0
        %727 = vmatprep.subr.mxu0 0.0
        %728 = vmatpush1.xpose.msra.mxu0 0.0
        %729 = vmatprep.subr.mxu0 0.0
        %730 = vmatpush1.xpose.msra.mxu0 0.0
        %731 = vmatprep.subr.mxu0 0.0
        %732 = vmatpush1.xpose.msra.mxu0 0.0
        %733 = vmatprep.subr.mxu0 0.0
        %734 = vmatpush1.xpose.msra.mxu0 %v701
        %735 = vmatprep.subr.mxu0 0.0
        %736 = vmatpush2.xpose.msra.mxu0 0.0
        %737 = vmatprep.subr.mxu0 0.0
        %738 = vmatpush2.xpose.msra.mxu0 0.0
        %739 = vmatprep.subr.mxu0 0.0
        %740 = vmatpush2.xpose.msra.mxu0 0.0
        %741 = vmatprep.subr.mxu0 0.0
        %742 = vmatpush2.xpose.msra.mxu0 0.0
        %743 = vmatprep.subr.mxu0 0.0
        %744 = vmatpush2.xpose.msra.mxu0 0.0
        %745 = vmatprep.subr.mxu0 0.0
        %746 = vmatpush2.xpose.msra.mxu0 0.0
        %747 = vmatprep.subr.mxu0 0.0
        %748 = vmatpush2.xpose.msra.mxu0 0.0
        %749 = vmatprep.subr.mxu0 0.0
        %750 = vmatpush2.xpose.msra.mxu0 0.0
        %751 = vmatprep.subr.mxu0 0.0
        %752 = vmatpush2.xpose.msra.mxu0 0.0
        %753 = vmatprep.subr.mxu0 0.0
        %754 = vmatpush2.xpose.msra.mxu0 0.0
        %755 = vmatprep.subr.mxu0 0.0
        %756 = vmatpush2.xpose.msra.mxu0 0.0
        %757 = vmatprep.subr.mxu0 0.0
        %758 = vmatpush2.xpose.msra.mxu0 0.0
        %759 = vmatprep.subr.mxu0 0.0
        %760 = vmatpush2.xpose.msra.mxu0 0.0
        %761 = vmatprep.subr.mxu0 0.0
        %762 = vmatpush2.xpose.msra.mxu0 0.0
        %763 = vmatprep.subr.mxu0 0.0
        %764 = vmatpush2.xpose.msra.mxu0 0.0
        %765 = vmatprep.subr.mxu0 0.0
        %766 = vmatpush2.xpose.msra.mxu0 0.0
        %767 = vmatprep.mubr.f32.mxu0 0.0
        %768 = vmatmul.mubr.f32.gmra.mxu0 %v699
        %v769 = vpop.f32.mrf.mxu0
        %v770 = vadd.f32 0.0, %v769
        %v771 = vpop.f32.mrf.mxu0
        %772 = vdwg.mxu0
        %v773 = vmul.f32 %v770, 0.17677669
        %vm774 = vcmask 64512
        %v775 = vsel %vm774, %v773, -inf
        %776 = vmax.xlane.f32.xlu0 %v775
        %v777 = vpop.xlane.xlu0 %776
        %v778 = vsub.f32 %v773, %v777
        %v779 = vmul.f32 %v778, 1.442695
        %v780 = vpow.pop %v779
        %v781 = vsel %vm774, %v780, 0.0
        %782 = vadd.xlane.f32.xlu0 %v781
        %v783 = vpop.xlane.xlu0 %782
        %v784 = vrcp.pop %v783
        %v785 = vmul.f32 %v780, %v784
        %v787 = vsel %vm774, %v785, 0
        %789 = vmatprep.subr.mxu0 0.0
        %790 = vmatpush1.msra.mxu0 0.0
        %791 = vmatprep.subr.mxu0 0.0
        %792 = vmatpush1.msra.mxu0 0.0
        %793 = vmatprep.subr.mxu0 0.0
        %794 = vmatpush1.msra.mxu0 0.0
        %795 = vmatprep.subr.mxu0 0.0
        %796 = vmatpush1.msra.mxu0 0.0
        %797 = vmatprep.subr.mxu0 0.0
        %798 = vmatpush1.msra.mxu0 0.0
        %799 = vmatprep.subr.mxu0 0.0
        %800 = vmatpush1.msra.mxu0 0.0
        %801 = vmatprep.subr.mxu0 0.0
        %802 = vmatpush1.msra.mxu0 0.0
        %803 = vmatprep.subr.mxu0 0.0
        %804 = vmatpush1.msra.mxu0 0.0
        %805 = vmatprep.subr.mxu0 0.0
        %806 = vmatpush1.msra.mxu0 0.0
        %807 = vmatprep.subr.mxu0 0.0
        %808 = vmatpush1.msra.mxu0 0.0
        %809 = vmatprep.subr.mxu0 0.0
        %810 = vmatpush1.msra.mxu0 0.0
        %811 = vmatprep.subr.mxu0 0.0
        %812 = vmatpush1.msra.mxu0 0.0
        %813 = vmatprep.subr.mxu0 0.0
        %814 = vmatpush1.msra.mxu0 0.0
        %815 = vmatprep.subr.mxu0 0.0
        %816 = vmatpush1.msra.mxu0 0.0
        %817 = vmatprep.subr.mxu0 0.0
        %818 = vmatpush1.msra.mxu0 0.0
        %819 = vmatprep.subr.mxu0 0.0
        %820 = vmatpush1.msra.mxu0 %v692
        %821 = vmatprep.subr.mxu0 0.0
        %822 = vmatpush2.msra.mxu0 0.0
        %823 = vmatprep.subr.mxu0 0.0
        %824 = vmatpush2.msra.mxu0 0.0
        %825 = vmatprep.subr.mxu0 0.0
        %826 = vmatpush2.msra.mxu0 0.0
        %827 = vmatprep.subr.mxu0 0.0
        %828 = vmatpush2.msra.mxu0 0.0
        %829 = vmatprep.subr.mxu0 0.0
        %830 = vmatpush2.msra.mxu0 0.0
        %831 = vmatprep.subr.mxu0 0.0
        %832 = vmatpush2.msra.mxu0 0.0
        %833 = vmatprep.subr.mxu0 0.0
        %834 = vmatpush2.msra.mxu0 0.0
        %835 = vmatprep.subr.mxu0 0.0
        %836 = vmatpush2.msra.mxu0 0.0
        %837 = vmatprep.subr.mxu0 0.0
        %838 = vmatpush2.msra.mxu0 0.0
        %839 = vmatprep.subr.mxu0 0.0
        %840 = vmatpush2.msra.mxu0 0.0
        %841 = vmatprep.subr.mxu0 0.0
        %842 = vmatpush2.msra.mxu0 0.0
        %843 = vmatprep.subr.mxu0 0.0
        %844 = vmatpush2.msra.mxu0 0.0
        %845 = vmatprep.subr.mxu0 0.0
        %846 = vmatpush2.msra.mxu0 0.0
        %847 = vmatprep.subr.mxu0 0.0
        %848 = vmatpush2.msra.mxu0 0.0
        %849 = vmatprep.subr.mxu0 0.0
        %850 = vmatpush2.msra.mxu0 0.0
        %851 = vmatprep.subr.mxu0 0.0
        %852 = vmatpush2.msra.mxu0 0.0
        %853 = vmatprep.mubr.f32.mxu0 0.0
        %854 = vmatmul.mubr.f32.gmra.mxu0 %v787
        %v855 = vpop.f32.mrf.mxu0
        %v856 = vadd.f32 0.0, %v855
        %v857 = vpop.f32.mrf.mxu0
        %858 = vdwg.mxu0
        %v859 = vld [vmem:[#allocation11] sm:$0xff]
        %v860 = vld [vmem:[#allocation11 + $0x8] sm:$0xff]
        %v861 = vld [vmem:[#allocation11 + $0x10] sm:$0xff]
        %v862 = vld [vmem:[#allocation11 + $0x18] sm:$0xff]
        %v863 = vld [vmem:[%s7] sm:$0x1]
        %v865 = vlaneseq
        %v866 = vshrl.u32 %v865, 7
        %v867 = vsub.s32 0, %v866
        %v868 = vrot.slane %v863, %v867
        %v871 = vsel %vm698, %v856, 0
        %873 = vmatprep.subr.mxu0 0.0
        %874 = vmatpush1.msra.mxu0 0.0
        %875 = vmatprep.subr.mxu0 0.0
        %876 = vmatpush1.msra.mxu0 0.0
        %877 = vmatprep.subr.mxu0 0.0
        %878 = vmatpush1.msra.mxu0 0.0
        %879 = vmatprep.subr.mxu0 0.0
        %880 = vmatpush1.msra.mxu0 0.0
        %881 = vmatprep.subr.mxu0 0.0
        %882 = vmatpush1.msra.mxu0 0.0
        %883 = vmatprep.subr.mxu0 0.0
        %884 = vmatpush1.msra.mxu0 0.0
        %885 = vmatprep.subr.mxu0 0.0
        %886 = vmatpush1.msra.mxu0 0.0
        %887 = vmatprep.subr.mxu0 0.0
        %888 = vmatpush1.msra.mxu0 0.0
        %889 = vmatprep.subr.mxu0 0.0
        %890 = vmatpush1.msra.mxu0 0.0
        %891 = vmatprep.subr.mxu0 0.0
        %892 = vmatpush1.msra.mxu0 0.0
        %893 = vmatprep.subr.mxu0 0.0
        %894 = vmatpush1.msra.mxu0 0.0
        %895 = vmatprep.subr.mxu0 0.0
        %896 = vmatpush1.msra.mxu0 0.0
        %897 = vmatprep.subr.mxu0 0.0
        %898 = vmatpush1.msra.mxu0 %v862
        %899 = vmatprep.subr.mxu0 0.0
        %900 = vmatpush1.msra.mxu0 %v861
        %901 = vmatprep.subr.mxu0 0.0
        %902 = vmatpush1.msra.mxu0 %v860
        %903 = vmatprep.subr.mxu0 0.0
        %904 = vmatpush1.msra.mxu0 %v859
        %905 = vmatprep.subr.mxu0 0.0
        %906 = vmatpush2.msra.mxu0 0.0
        %907 = vmatprep.subr.mxu0 0.0
        %908 = vmatpush2.msra.mxu0 0.0
        %909 = vmatprep.subr.mxu0 0.0
        %910 = vmatpush2.msra.mxu0 0.0
        %911 = vmatprep.subr.mxu0 0.0
        %912 = vmatpush2.msra.mxu0 0.0
        %913 = vmatprep.subr.mxu0 0.0
        %914 = vmatpush2.msra.mxu0 0.0
        %915 = vmatprep.subr.mxu0 0.0
        %916 = vmatpush2.msra.mxu0 0.0
        %917 = vmatprep.subr.mxu0 0.0
        %918 = vmatpush2.msra.mxu0 0.0
        %919 = vmatprep.subr.mxu0 0.0
        %920 = vmatpush2.msra.mxu0 0.0
        %921 = vmatprep.subr.mxu0 0.0
        %922 = vmatpush2.msra.mxu0 0.0
        %923 = vmatprep.subr.mxu0 0.0
        %924 = vmatpush2.msra.mxu0 0.0
        %925 = vmatprep.subr.mxu0 0.0
        %926 = vmatpush2.msra.mxu0 0.0
        %927 = vmatprep.subr.mxu0 0.0
        %928 = vmatpush2.msra.mxu0 0.0
        %929 = vmatprep.subr.mxu0 0.0
        %930 = vmatpush2.msra.mxu0 0.0
        %931 = vmatprep.subr.mxu0 0.0
        %932 = vmatpush2.msra.mxu0 0.0
        %933 = vmatprep.subr.mxu0 0.0
        %934 = vmatpush2.msra.mxu0 0.0
        %935 = vmatprep.subr.mxu0 0.0
        %936 = vmatpush2.msra.mxu0 0.0
        %937 = vmatprep.mubr.f32.mxu0 0.0
        %938 = vmatmul.mubr.f32.gmra.mxu0 %v871
        %v939 = vpop.f32.mrf.mxu0
        %v940 = vadd.f32 %v868, %v939
        %v941 = vpop.f32.mrf.mxu0
        %942 = vdwg.mxu0
        %v943 = vmax.f32 %v940, 0.0
        %v944 = vld [vmem:[#allocation12] sm:$0xff]
        %v945 = vld [vmem:[#allocation12 + $0x8] sm:$0xff]
        %v946 = vld [vmem:[#allocation12 + $0x10] sm:$0xff]
        %v947 = vld [vmem:[#allocation12 + $0x18] sm:$0xff]
        %v948 = vld [vmem:[%s9] sm:$0x1]
        %v950 = vlaneseq
        %v951 = vshrl.u32 %v950, 7
        %v952 = vsub.s32 0, %v951
        %v953 = vrot.slane %v948, %v952
        %v956 = vsel %vm698, %v943, 0
        %958 = vmatprep.subr.mxu0 0.0
        %959 = vmatpush1.msra.mxu0 0.0
        %960 = vmatprep.subr.mxu0 0.0
        %961 = vmatpush1.msra.mxu0 0.0
        %962 = vmatprep.subr.mxu0 0.0
        %963 = vmatpush1.msra.mxu0 0.0
        %964 = vmatprep.subr.mxu0 0.0
        %965 = vmatpush1.msra.mxu0 0.0
        %966 = vmatprep.subr.mxu0 0.0
        %967 = vmatpush1.msra.mxu0 0.0
        %968 = vmatprep.subr.mxu0 0.0
        %969 = vmatpush1.msra.mxu0 0.0
        %970 = vmatprep.subr.mxu0 0.0
        %971 = vmatpush1.msra.mxu0 0.0
        %972 = vmatprep.subr.mxu0 0.0
        %973 = vmatpush1.msra.mxu0 0.0
        %974 = vmatprep.subr.mxu0 0.0
        %975 = vmatpush1.msra.mxu0 0.0
        %976 = vmatprep.subr.mxu0 0.0
        %977 = vmatpush1.msra.mxu0 0.0
        %978 = vmatprep.subr.mxu0 0.0
        %979 = vmatpush1.msra.mxu0 0.0
        %980 = vmatprep.subr.mxu0 0.0
        %981 = vmatpush1.msra.mxu0 0.0
        %982 = vmatprep.subr.mxu0 0.0
        %983 = vmatpush1.msra.mxu0 %v947
        %984 = vmatprep.subr.mxu0 0.0
        %985 = vmatpush1.msra.mxu0 %v946
        %986 = vmatprep.subr.mxu0 0.0
        %987 = vmatpush1.msra.mxu0 %v945
        %988 = vmatprep.subr.mxu0 0.0
        %989 = vmatpush1.msra.mxu0 %v944
        %990 = vmatprep.subr.mxu0 0.0
        %991 = vmatpush2.msra.mxu0 0.0
        %992 = vmatprep.subr.mxu0 0.0
        %993 = vmatpush2.msra.mxu0 0.0
        %994 = vmatprep.subr.mxu0 0.0
        %995 = vmatpush2.msra.mxu0 0.0
        %996 = vmatprep.subr.mxu0 0.0
        %997 = vmatpush2.msra.mxu0 0.0
        %998 = vmatprep.subr.mxu0 0.0
        %999 = vmatpush2.msra.mxu0 0.0
        %1000 = vmatprep.subr.mxu0 0.0
        %1001 = vmatpush2.msra.mxu0 0.0
        %1002 = vmatprep.subr.mxu0 0.0
        %1003 = vmatpush2.msra.mxu0 0.0
        %1004 = vmatprep.subr.mxu0 0.0
        %1005 = vmatpush2.msra.mxu0 0.0
        %1006 = vmatprep.subr.mxu0 0.0
        %1007 = vmatpush2.msra.mxu0 0.0
        %1008 = vmatprep.subr.mxu0 0.0
        %1009 = vmatpush2.msra.mxu0 0.0
        %1010 = vmatprep.subr.mxu0 0.0
        %1011 = vmatpush2.msra.mxu0 0.0
        %1012 = vmatprep.subr.mxu0 0.0
        %1013 = vmatpush2.msra.mxu0 0.0
        %1014 = vmatprep.subr.mxu0 0.0
        %1015 = vmatpush2.msra.mxu0 0.0
        %1016 = vmatprep.subr.mxu0 0.0
        %1017 = vmatpush2.msra.mxu0 0.0
        %1018 = vmatprep.subr.mxu0 0.0
        %1019 = vmatpush2.msra.mxu0 0.0
        %1020 = vmatprep.subr.mxu0 0.0
        %1021 = vmatpush2.msra.mxu0 0.0
        %1022 = vmatprep.mubr.f32.mxu0 0.0
        %1023 = vmatmul.mubr.f32.gmra.mxu0 %v956
        %v1024 = vpop.f32.mrf.mxu0
        %v1025 = vadd.f32 %v953, %v1024
        %v1026 = vpop.f32.mrf.mxu0
        %1027 = vdwg.mxu0
        %v1028 = vmax.f32 %v1025, 0.0
        %v1029 = vld [vmem:[%s10] sm:$0x1]
        %v1031 = vlaneseq
        %v1032 = vshrl.u32 %v1031, 7
        %v1033 = vsub.s32 0, %v1032
        %v1034 = vrot.slane %v1029, %v1033
        %v1036 = vmul.f32 %v1028, %v1034
        %v1037 = vsel %vm698, %v1036, 0.0
        %1038 = vadd.xlane.f32.xlu0 %v1037
        %v1039 = vpop.xlane.xlu0 %1038
        %v1040 = vld [vmem:[#allocation2] sm:$0x1]
        %v1042 = vlaneseq
        %v1043 = vshrl.u32 %v1042, 7
        %v1044 = vsub.s32 0, %v1043
        %v1045 = vrot.slane %v1040, %v1044
        %v1047 = vadd.f32 %v1039, %v1045
        %v1048 = vmax.f32 %v1047, 0.0
        %v1049 = vand.u32 2147483647, %v1047
        %v1050 = vsub.f32 0.0, %v1049
        %v1051 = vmul.f32 %v1050, 1.442695
        %v1052 = vpow.pop %v1051
        %v1053 = vadd.f32 %v1052, 1.0
        %v1054 = vlog2.pop %v1053
        %v1055 = vmul.f32 %v1054, 0.6931472
        %v1056 = vadd.f32 %v1048, %v1055
        %vm1057 = vcmask 7168
        %v1058 = vsel %vm1057, %v1056, 0.0
        %1059 = vadd.xlane.f32.xlu0 %v1058
        %v1060 = vpop.xlane.xlu0 %1059
        %v1061 = vrot.slane %v1060, 4
        %v1062 = vadd.f32 %v1060, %v1061
        %v1063 = vrot.slane %v1062, 2
        %v1064 = vadd.f32 %v1062, %v1063
        %v1065 = vrot.slane %v1064, 1
        %v1066 = vadd.f32 %v1064, %v1065
        %s1067 = vtos %v1066
        %v1068 = vstv %s1067
        %1069 = vst [vmem:[%s525] sm:$0xff] %v1068
        %s1070 = sand.u32 %s306, 1
        %s1071 = scalar_lea.sflag [#allocation5], %s1070
        %s1072 = sand.u32 %s306, 1
        %s1073 = smul.addr %s1072, 8
        %s1074 = scalar_lea.vmem [#allocation14], %s1073
        // Predicated region
        $region93: #{tpu_custom_call.1} parent=67 // pred_check
          %p1075 = pneg %p316
        $region94: #{tpu_custom_call.1} parent=67 // pred_check_branch
          %1077 = sbr.rel (%p1075) target = $region96
        $region95: #{tpu_custom_call.1} parent=67 // pred_region
          %s1079 = ssub.s32 128, 128
          %1080 = vsyncadd %s1071, %s1079
          %s1081 = smul.addr %s36, 128
          %s1082 = scalar_lea.hbm %s12, %s1081
          %s1084 = sshll.u32 %s1074, 4
          %s1085 = int_to_ptr.vmem [resolvable:$true] %s1084
          %1087 = dma.vmem_to_hbm [thread:$0]  %s1085, 128, %s1082, %s1071
        $region96: #{tpu_custom_call.1} parent=67 // pred_fallthru
          _
      $region68: #{tpu_custom_call.1} parent=5 // pred_fallthru
        _
      %p1088 = scmp.le.s32.totalorder 2, %s31
      // Predicated region
      $region97: #{tpu_custom_call.1} parent=5 // pred_check
        %p1089 = pneg %p1088
      $region98: #{tpu_custom_call.1} parent=5 // pred_check_branch
        %1091 = sbr.rel (%p1089) target = $region100
      $region99: #{tpu_custom_call.1} parent=5 // pred_region
        %s1092 = ssub.s32 %s31, 2
        // Predicated region
        $region101: #{tpu_custom_call.1} parent=99 // pred_check
          %p1093 = pneg %p322
        $region102: #{tpu_custom_call.1} parent=99 // pred_check_branch
          %1095 = sbr.rel (%p1093) target = $region104
        $region103: #{tpu_custom_call.1} parent=99 // pred_region
          %s1096 = sand.u32 %s307, 1
          %s1097 = scalar_lea.sflag [#allocation5], %s1096
          %s1098 = sand.u32 %s307, 1
          %s1099 = smul.addr %s1098, 8
          %s1100 = scalar_lea.vmem [#allocation14], %s1099
          %1101 = dma.done %s1097, 128
        $region104: #{tpu_custom_call.1} parent=99 // pred_fallthru
          _
      $region100: #{tpu_custom_call.1} parent=5 // pred_fallthru
        _
    $region6: #{tpu_custom_call.1} parent=1 // loop_footer
      %s35 = sadd.s32 1, %s31
    $region7: #{tpu_custom_call.1} parent=1 // loop_footer_branch
      %30 = sbr.rel target = $region3
    $region8: #{tpu_custom_call.1} parent=1 // loop_exit
      _
    %1102 = vsyncpa [#allocation4], 1
    %s1103 = scalar_lea.sflag [#allocation4], 1
    %1104 = vsyncpa %s1103, 1
    %1105 = vsyncpa [#allocation7], 1
    %s1106 = scalar_lea.sflag [#allocation7], 1
    %1107 = vsyncpa %s1106, 1
    %1108 = vsyncpa [#allocation10], 1
    %1109 = vsyncpa [#allocation13], 1
    %1110 = vsyncpa [#allocation5], 1
    %s1111 = scalar_lea.sflag [#allocation5], 1
    %1112 = vsyncpa %s1111, 1

</llo_original>
